<compile_context>
chip_gen: v7x
topology: tpu7x:2x2x1
jax: 0.10.0
libtpu: 0.0.40
codegen_flags: <defaults>
</compile_context>

<pallas_src>
import jax
import jax.numpy as jnp
from jax import lax
from jax.experimental import pallas as pl
from jax.experimental.pallas import tpu as pltpu

# ---------------- model configuration (small, deterministic) ----------------
BATCH             = 2
INPUT_DIM_SPECTRA = 32
INPUT_DIM_GAIA    = 16
D_MODEL_SPECTRA   = 64     # multiple of 8 -> pad-to-8 is a no-op (as in module)
D_MODEL_GAIA      = 32     # multiple of 8
NUM_CLASSES       = 8
LN_EPS            = 1e-5

# ---------------- fused / packed layout constants ---------------------------
D_FUSED  = D_MODEL_SPECTRA + D_MODEL_GAIA          # 96  (spectra | gaia lanes)
IN_W     = INPUT_DIM_SPECTRA + INPUT_DIM_GAIA      # 48
H_FUSED  = 4 * D_FUSED                             # 384 (fused FFN hidden)
OUT_PAD  = 128                                     # lane-dense output slab
VEC_W    = H_FUSED                                 # width of packed vector rows

# row offsets inside the 96-wide packed weight slab; every offset is a
# multiple of 16 so static slices stay aligned with the bf16 sublane packing.
ROW_W_IN   = 0                       # x -> h0            (48 rows)
ROW_W_ATTN = ROW_W_IN + IN_W         # 48: x -> attn      (48 rows, folded MHA)
ROW_W_FF2  = ROW_W_ATTN + IN_W       # 96: ffn hidden -> d_fused (384 rows)
W96_ROWS   = ROW_W_FF2 + H_FUSED     # 480

# rows of the packed f32 vector buffer (each left-aligned, zero padded)
R_B_IN, R_B_ATTN, R_B_FF1, R_B_FF2 = 0, 1, 2, 3
R_G1, R_BE1, R_G2, R_BE2, R_CBIAS  = 4, 5, 6, 7, 8
N_VEC_ROWS = 9


# --------------------------------- kernel -----------------------------------
def _fusion_kernel(x_ref, w96_ref, w384_ref, wcls_ref, vec_ref, out_ref):
    xb = x_ref[...].astype(jnp.bfloat16)              # (TB, 48) bf16 operand

    def mm(a, lo, hi):                                 # static slice of slab
        return jnp.dot(a.astype(jnp.bfloat16), w96_ref[lo:hi, :],
                       preferred_element_type=jnp.float32)

    def vec(row, width):                               # (1, width) packed vec
        return vec_ref[row:row + 1, 0:width]

    # lane masks selecting the spectra (0..63) / gaia (64..95) segments
    lane = lax.broadcasted_iota(jnp.int32, (1, D_FUSED), 1)
    mask_s = (lane < D_MODEL_SPECTRA).astype(jnp.float32)
    mask_g = 1.0 - mask_s
    inv_ns = 1.0 / D_MODEL_SPECTRA
    inv_ng = 1.0 / D_MODEL_GAIA

    def seg_layernorm(z, gamma, beta):
        # per-branch LayerNorm on the fused layout; one-pass stats
        # (var = E[z^2] - mu^2); gaia-segment stats derived by subtraction
        # from the full-row sums so only the spectra segment is masked.
        z2 = z * z
        s_all = jnp.sum(z,  axis=-1, keepdims=True)
        q_all = jnp.sum(z2, axis=-1, keepdims=True)
        s_s = jnp.sum(z * mask_s,  axis=-1, keepdims=True)
        q_s = jnp.sum(z2 * mask_s, axis=-1, keepdims=True)
        s_g = s_all - s_s
        q_g = q_all - q_s
        mu  = (s_s * inv_ns) * mask_s + (s_g * inv_ng) * mask_g
        ex2 = (q_s * inv_ns) * mask_s + (q_g * inv_ng) * mask_g
        var = ex2 - mu * mu
        return (z - mu) * lax.rsqrt(var + LN_EPS) * gamma + beta

    # two INDEPENDENT matmuls from x: fused input projections and the folded
    # cross-proj -> v_proj -> out_proj attention chain (linear in x).
    h0   = mm(xb, ROW_W_IN,   ROW_W_ATTN) + vec(R_B_IN,   D_FUSED)
    attn = mm(xb, ROW_W_ATTN, ROW_W_FF2)  + vec(R_B_ATTN, D_FUSED)

    h1 = seg_layernorm(h0 + attn, vec(R_G1, D_FUSED), vec(R_BE1, D_FUSED))

    # fused FFN (block-diagonal): one (96,384) matmul + ReLU + one (384,96)
    ff = jnp.maximum(
        jnp.dot(h1.astype(jnp.bfloat16), w384_ref[...],
                preferred_element_type=jnp.float32) + vec(R_B_FF1, H_FUSED),
        0.0)
    ffn = mm(ff, ROW_W_FF2, W96_ROWS) + vec(R_B_FF2, D_FUSED)

    h2 = seg_layernorm(h1 + ffn, vec(R_G2, D_FUSED), vec(R_BE2, D_FUSED))

    # classifier: LayerNorm over the full fused width (affine folded into the
    # classifier weights), then one matmul into a 128-lane padded slab.
    mu  = jnp.mean(h2, axis=-1, keepdims=True)
    ex2 = jnp.mean(h2 * h2, axis=-1, keepdims=True)
    zc  = (h2 - mu) * lax.rsqrt(ex2 - mu * mu + LN_EPS)
    logits = jnp.dot(zc.astype(jnp.bfloat16), wcls_ref[...],
                     preferred_element_type=jnp.float32) + vec(R_CBIAS, OUT_PAD)
    out_ref[...] = logits.astype(out_ref.dtype)


# -------------------------------- wrapper ------------------------------------
def _choose_tile_b(b):
    """Biggest single tile up to 512 rows; for larger batches pick a tile so
    the grid has >= 2 steps (v7x megacore sharding via the parallel grid axis);
    on v5e/v6e (single TC) this still keeps the tile as large as possible."""
    b8 = ((b + 7) // 8) * 8
    if b8 <= 512:
        return b8
    half = ((b8 + 15) // 16) * 8          # ceil(b8 / 2) rounded up to 8
    return min(1024, half)


def asymmetric_star_classifier(x_spectra, x_gaia, packed):
    w96, w384, wcls, vecs = packed
    b = x_spectra.shape[0]
    # concatenating the raw inputs happens outside the kernel (tiny, one-off);
    # the fused lane layout avoids any in-kernel concat / relayout.
    x_in = jnp.concatenate([x_spectra, x_gaia], axis=-1).astype(jnp.float32)

    tile_b = _choose_tile_b(b)
    b_pad = pl.cdiv(b, tile_b) * tile_b
    if b_pad != b:
        x_in = jnp.pad(x_in, ((0, b_pad - b), (0, 0)))

    const2 = lambda i: (0, 0)   # constant index_map -> weights stay resident
    out = pl.pallas_call(
        _fusion_kernel,
        out_shape=jax.ShapeDtypeStruct((b_pad, OUT_PAD), jnp.float32),
        grid_spec=pltpu.PrefetchScalarGridSpec(
            num_scalar_prefetch=0,
            grid=(b_pad // tile_b,),
            in_specs=[
                pl.BlockSpec((tile_b, IN_W), lambda i: (i, 0)),
                pl.BlockSpec(w96.shape, const2),
                pl.BlockSpec(w384.shape, const2),
                pl.BlockSpec(wcls.shape, const2),
                pl.BlockSpec(vecs.shape, const2),
            ],
            out_specs=pl.BlockSpec((tile_b, OUT_PAD), lambda i: (i, 0)),
        ),
        compiler_params=pltpu.CompilerParams(
            dimension_semantics=("parallel",)),   # shards batch across TCs (v7x)
    )(x_in, w96, w384, wcls, vecs)
    return out[:b, :NUM_CLASSES]


# -------------------------- deterministic parameters -------------------------
def init_params(key):
    keys = iter(jax.random.split(key, 64))

    def lin(din, dout):
        # stored pre-transposed: W^T of shape (din, dout); bias as (1, dout)
        w_t = jax.random.normal(next(keys), (din, dout), jnp.float32) / jnp.sqrt(
            jnp.float32(din))
        b = 0.01 * jax.random.normal(next(keys), (1, dout), jnp.float32)
        return [w_t, b]

    def ln(d):
        return [jnp.ones((1, d), jnp.float32), jnp.zeros((1, d), jnp.float32)]

    def cross_block(d):
        p = []
        p += lin(d, d)          # MHA value projection (slice of in_proj)
        p += lin(d, d)          # MHA out_proj
        p += ln(d)              # norm1
        p += lin(d, 4 * d)      # ffn linear 1
        p += lin(4 * d, d)      # ffn linear 2
        p += ln(d)              # norm2
        return p

    params = []
    params += lin(INPUT_DIM_SPECTRA, D_MODEL_SPECTRA)   # input_proj_spectra
    params += lin(INPUT_DIM_GAIA, D_MODEL_GAIA)         # input_proj_gaia
    params += lin(D_MODEL_GAIA, D_MODEL_SPECTRA)        # gaia_to_spectra_proj
    params += lin(D_MODEL_SPECTRA, D_MODEL_GAIA)        # spectra_to_gaia_proj
    params += cross_block(D_MODEL_SPECTRA)              # cross_attn_block_spectra
    params += cross_block(D_MODEL_GAIA)                 # cross_attn_block_gaia
    params += ln(D_MODEL_SPECTRA + D_MODEL_GAIA)        # classifier LayerNorm
    params += lin(D_MODEL_SPECTRA + D_MODEL_GAIA, NUM_CLASSES)  # classifier Linear
    return params


# ------------------- pack per-layer params into fused buffers ----------------
def pack_params(params):
    (wps, bps, wpg, bpg, wg2s, bg2s, ws2g, bs2g,
     s_wv, s_bv, s_wo, s_bo, s_g1, s_b1, s_w1, s_bf1, s_w2, s_bf2, s_g2, s_b2,
     g_wv, g_bv, g_wo, g_bo, g_g1, g_b1, g_w1, g_bf1, g_w2, g_bf2, g_g2, g_b2,
     c_g, c_b, c_w, c_bias) = params

    f32 = jnp.float32
    Ds, Dg, D = D_MODEL_SPECTRA, D_MODEL_GAIA, D_FUSED

    def blkdiag(a, b):
        ra, ca = a.shape
        rb, cb = b.shape
        return jnp.block([[a, jnp.zeros((ra, cb), f32)],
                          [jnp.zeros((rb, ca), f32), b]])

    def cat_row(*parts):
        return jnp.concatenate([p.reshape(1, -1) for p in parts], axis=1)

    # fused building blocks (all folding done in f32 before the bf16 cast)
    w_in = blkdiag(wps, wpg)                                   # (48, 96)
    # [xs | xg] @ w_x = [xg @ wg2s | xs @ ws2g] = [kv_spectra | kv_gaia]
    w_x  = jnp.block([[jnp.zeros((Ds, Ds), f32), ws2g],
                      [wg2s, jnp.zeros((Dg, Dg), f32)]])       # (96, 96)
    w_v  = blkdiag(s_wv, g_wv)                                 # (96, 96)
    w_o  = blkdiag(s_wo, g_wo)                                 # (96, 96)
    b_in = cat_row(bps, bpg)
    b_x  = cat_row(bg2s, bs2g)
    b_v  = cat_row(s_bv, g_bv)
    b_o  = cat_row(s_bo, g_bo)

    # Fold the seq-len-1 MHA chain kv -> v_proj -> out_proj into one linear
    # map, then compose with the input projection so attn is linear in x.
    w_attn = w_x @ w_v @ w_o                                   # (96, 96)
    b_attn = b_x @ w_v @ w_o + b_v @ w_o + b_o                 # (1, 96)
    w_attn_x = w_in @ w_attn                                   # (48, 96)
    b_attn_x = b_in @ w_attn + b_attn                          # (1, 96)

    w_ff1 = blkdiag(s_w1, g_w1)                                # (96, 384)
    w_ff2 = blkdiag(s_w2, g_w2)                                # (384, 96)

    # Fold the classifier LayerNorm affine into the classifier linear:
    #   (n * g + b) @ W + c  ==  n @ (diag(g) @ W) + (b @ W + c)
    wcls_f = c_g.reshape(-1, 1) * c_w                          # (96, 8)
    bcls_f = c_b.reshape(1, -1) @ c_w + c_bias.reshape(1, -1)  # (1, 8)

    # packed, lane-dense buffers (weights stored bf16 for single-pass MXU)
    w96  = jnp.concatenate([w_in, w_attn_x, w_ff2], axis=0).astype(jnp.bfloat16)
    w384 = w_ff1.astype(jnp.bfloat16)                          # (96, 384)
    wcls = jnp.concatenate(
        [wcls_f, jnp.zeros((D, OUT_PAD - NUM_CLASSES), f32)],
        axis=1).astype(jnp.bfloat16)                           # (96, 128)

    def row(*parts):
        v = cat_row(*parts)
        return jnp.pad(v, ((0, 0), (0, VEC_W - v.shape[1])))

    vecs = jnp.concatenate([
        row(b_in),              # R_B_IN
        row(b_attn_x),          # R_B_ATTN  (folded attention bias)
        row(s_bf1, g_bf1),      # R_B_FF1   (width 384)
        row(s_bf2, g_bf2),      # R_B_FF2
        row(s_g1, g_g1),        # R_G1
        row(s_b1, g_b1),        # R_BE1
        row(s_g2, g_g2),        # R_G2
        row(s_b2, g_b2),        # R_BE2
        row(bcls_f),            # R_CBIAS   (width 8, zero padded; kernel reads 128)
    ], axis=0).astype(f32)      # (9, 384)

    return w96, w384, wcls, vecs


# --------------------------- pure-JAX reference ------------------------------
def reference(x_s, x_g, params):
    (wps, bps, wpg, bpg, wg2s, bg2s, ws2g, bs2g,
     s_wv, s_bv, s_wo, s_bo, s_g1, s_b1, s_w1, s_bf1, s_w2, s_bf2, s_g2, s_b2,
     g_wv, g_bv, g_wo, g_bo, g_g1, g_b1, g_w1, g_bf1, g_w2, g_bf2, g_g2, g_b2,
     c_g, c_b, c_w, c_bias) = params

    def ln(x, g, b):
        mu = x.mean(-1, keepdims=True)
        var = ((x - mu) ** 2).mean(-1, keepdims=True)
        return (x - mu) / jnp.sqrt(var + LN_EPS) * g + b

    xs = x_s @ wps + bps
    xg = x_g @ wpg + bpg
    kv_s = xg @ wg2s + bg2s
    kv_g = xs @ ws2g + bs2g

    def block(q, kv, wv, bv, wo, bo, g1, b1, w1, bf1, w2, bf2, g2, b2):
        attn = (kv @ wv + bv) @ wo + bo
        h = ln(q + attn, g1, b1)
        f = jnp.maximum(h @ w1 + bf1, 0.0) @ w2 + bf2
        return ln(h + f, g2, b2)

    xs_o = block(xs, kv_s, s_wv, s_bv, s_wo, s_bo, s_g1, s_b1,
                 s_w1, s_bf1, s_w2, s_bf2, s_g2, s_b2)
    xg_o = block(xg, kv_g, g_wv, g_bv, g_wo, g_bo, g_g1, g_b1,
                 g_w1, g_bf1, g_w2, g_bf2, g_g2, g_b2)
    fused = jnp.concatenate([xs_o, xg_o], axis=-1)
    return ln(fused, c_g, c_b) @ c_w + c_bias


# ----------------------------------- main ------------------------------------
if __name__ == "__main__":
    key = jax.random.PRNGKey(0)
    k_xs, k_xg, k_p = jax.random.split(key, 3)

    x_spectra = jax.random.normal(k_xs, (BATCH, INPUT_DIM_SPECTRA), jnp.float32)
    x_gaia = jax.random.normal(k_xg, (BATCH, INPUT_DIM_GAIA), jnp.float32)
    params = init_params(k_p)
    packed = pack_params(params)

    logits = asymmetric_star_classifier(x_spectra, x_gaia, packed)
    logits = jax.block_until_ready(logits)

    ref = reference(x_spectra, x_gaia, params)
    assert logits.shape == (BATCH, NUM_CLASSES)
    # bf16 MXU operands (f32 accumulation) drift a few 1e-3..1e-2 from the
    # pure-f32 reference; use a scale-aware tolerance with ample margin.
    err = float(jnp.max(jnp.abs(logits - ref)))
    tol = float(5e-2 * jnp.maximum(1.0, jnp.max(jnp.abs(ref))))
    assert err < tol, f"mismatch vs pure-JAX reference: {err} (tol {tol})"

    print("KERNEL_OK")
</pallas_src>

<mosaic_0001>
module attributes {stable_mosaic.version = 11 : i64} {
  func.func @_fusion_kernel(%arg0: i32, %arg1: memref<8x48xf32, #tpu.memory_space<vmem>>, %arg2: memref<480x96xbf16, #tpu.memory_space<vmem>>, %arg3: memref<96x384xbf16, #tpu.memory_space<vmem>>, %arg4: memref<96x128xbf16, #tpu.memory_space<vmem>>, %arg5: memref<9x384xf32, #tpu.memory_space<vmem>>, %arg6: memref<8x128xf32, #tpu.memory_space<vmem>>) attributes {dimension_semantics = [#tpu.dimension_semantics<parallel>], iteration_bounds = array<i64: 1>, scalar_prefetch = 0 : i64, scratch_operands = 0 : i64, tpu.core_type = #tpu.core_type<tc>, window_params = [{transform_indices = @transform_0, window_bounds = array<i64: 8, 48>}, {pipeline_mode = #tpu.pipeline_mode<synchronous>, transform_indices = @transform_1, window_bounds = array<i64: 480, 96>}, {pipeline_mode = #tpu.pipeline_mode<synchronous>, transform_indices = @transform_2, window_bounds = array<i64: 96, 384>}, {pipeline_mode = #tpu.pipeline_mode<synchronous>, transform_indices = @transform_3, window_bounds = array<i64: 96, 128>}, {pipeline_mode = #tpu.pipeline_mode<synchronous>, transform_indices = @transform_4, window_bounds = array<i64: 9, 384>}, {transform_indices = @transform_5, window_bounds = array<i64: 8, 128>}]} {
    %c0 = arith.constant 0 : index
    %c0_0 = arith.constant 0 : index
    %0 = vector.load %arg1[%c0, %c0_0] : memref<8x48xf32, #tpu.memory_space<vmem>>, vector<8x48xf32>
    %1 = arith.truncf %0 : vector<8x48xf32> to vector<8x48xbf16>
    %2 = tpu.iota {dimensions = array<i32: 1>} : vector<1x96xi32>
    %c64_i32 = arith.constant 64 : i32
    %3 = vector.broadcast %c64_i32 : i32 to vector<1x96xi32>
    %4 = arith.cmpi slt, %2, %3 : vector<1x96xi32>
    %5 = arith.extui %4 : vector<1x96xi1> to vector<1x96xi32>
    %6 = arith.sitofp %5 : vector<1x96xi32> to vector<1x96xf32>
    %cst = arith.constant 1.000000e+00 : f32
    %7 = vector.broadcast %cst : f32 to vector<1x96xf32>
    %8 = arith.subf %7, %6 : vector<1x96xf32>
    %c0_1 = arith.constant 0 : index
    %c0_2 = arith.constant 0 : index
    %9 = vector.load %arg2[%c0_1, %c0_2] : memref<480x96xbf16, #tpu.memory_space<vmem>>, vector<48x96xbf16>
    %cst_3 = arith.constant dense<0.000000e+00> : vector<8x96xf32>
    %10 = tpu.matmul %1, %9, %cst_3 {dimension_numbers = #tpu.dot_dimension_numbers<[1], [0], [0], [1], [0, 0, 1, 1], [], []>} : vector<8x48xbf16>, vector<48x96xbf16>, vector<8x96xf32> -> vector<8x96xf32>
    %c0_4 = arith.constant 0 : index
    %c0_5 = arith.constant 0 : index
    %11 = vector.load %arg5[%c0_4, %c0_5] : memref<9x384xf32, #tpu.memory_space<vmem>>, vector<1x96xf32>
    %12 = vector.broadcast %11 : vector<1x96xf32> to vector<8x96xf32>
    %13 = arith.addf %10, %12 : vector<8x96xf32>
    %c48 = arith.constant 48 : index
    %c0_6 = arith.constant 0 : index
    %14 = vector.load %arg2[%c48, %c0_6] : memref<480x96xbf16, #tpu.memory_space<vmem>>, vector<48x96xbf16>
    %cst_7 = arith.constant dense<0.000000e+00> : vector<8x96xf32>
    %15 = tpu.matmul %1, %14, %cst_7 {dimension_numbers = #tpu.dot_dimension_numbers<[1], [0], [0], [1], [0, 0, 1, 1], [], []>} : vector<8x48xbf16>, vector<48x96xbf16>, vector<8x96xf32> -> vector<8x96xf32>
    %c1 = arith.constant 1 : index
    %c0_8 = arith.constant 0 : index
    %16 = vector.load %arg5[%c1, %c0_8] : memref<9x384xf32, #tpu.memory_space<vmem>>, vector<1x96xf32>
    %17 = vector.broadcast %16 : vector<1x96xf32> to vector<8x96xf32>
    %18 = arith.addf %15, %17 : vector<8x96xf32>
    %19 = arith.addf %13, %18 : vector<8x96xf32>
    %c4 = arith.constant 4 : index
    %c0_9 = arith.constant 0 : index
    %20 = vector.load %arg5[%c4, %c0_9] : memref<9x384xf32, #tpu.memory_space<vmem>>, vector<1x96xf32>
    %c5 = arith.constant 5 : index
    %c0_10 = arith.constant 0 : index
    %21 = vector.load %arg5[%c5, %c0_10] : memref<9x384xf32, #tpu.memory_space<vmem>>, vector<1x96xf32>
    %22 = arith.mulf %19, %19 : vector<8x96xf32>
    %cst_11 = arith.constant dense<0.000000e+00> : vector<8xf32>
    %23 = vector.multi_reduction <add>, %19, %cst_11 [1] : vector<8x96xf32> to vector<8xf32>
    %24 = vector.shape_cast %23 : vector<8xf32> to vector<8x1xf32>
    %cst_12 = arith.constant dense<0.000000e+00> : vector<8xf32>
    %25 = vector.multi_reduction <add>, %22, %cst_12 [1] : vector<8x96xf32> to vector<8xf32>
    %26 = vector.shape_cast %25 : vector<8xf32> to vector<8x1xf32>
    %27 = vector.broadcast %6 : vector<1x96xf32> to vector<8x96xf32>
    %28 = arith.mulf %19, %27 : vector<8x96xf32>
    %cst_13 = arith.constant dense<0.000000e+00> : vector<8xf32>
    %29 = vector.multi_reduction <add>, %28, %cst_13 [1] : vector<8x96xf32> to vector<8xf32>
    %30 = vector.shape_cast %29 : vector<8xf32> to vector<8x1xf32>
    %31 = vector.broadcast %6 : vector<1x96xf32> to vector<8x96xf32>
    %32 = arith.mulf %22, %31 : vector<8x96xf32>
    %cst_14 = arith.constant dense<0.000000e+00> : vector<8xf32>
    %33 = vector.multi_reduction <add>, %32, %cst_14 [1] : vector<8x96xf32> to vector<8xf32>
    %34 = vector.shape_cast %33 : vector<8xf32> to vector<8x1xf32>
    %35 = arith.subf %24, %30 : vector<8x1xf32>
    %36 = arith.subf %26, %34 : vector<8x1xf32>
    %cst_15 = arith.constant 1.562500e-02 : f32
    %37 = vector.broadcast %cst_15 : f32 to vector<8x1xf32>
    %38 = arith.mulf %30, %37 : vector<8x1xf32>
    %39 = vector.broadcast %38 : vector<8x1xf32> to vector<8x96xf32>
    %40 = vector.broadcast %6 : vector<1x96xf32> to vector<8x96xf32>
    %41 = arith.mulf %39, %40 : vector<8x96xf32>
    %cst_16 = arith.constant 3.125000e-02 : f32
    %42 = vector.broadcast %cst_16 : f32 to vector<8x1xf32>
    %43 = arith.mulf %35, %42 : vector<8x1xf32>
    %44 = vector.broadcast %43 : vector<8x1xf32> to vector<8x96xf32>
    %45 = vector.broadcast %8 : vector<1x96xf32> to vector<8x96xf32>
    %46 = arith.mulf %44, %45 : vector<8x96xf32>
    %47 = arith.addf %41, %46 : vector<8x96xf32>
    %cst_17 = arith.constant 1.562500e-02 : f32
    %48 = vector.broadcast %cst_17 : f32 to vector<8x1xf32>
    %49 = arith.mulf %34, %48 : vector<8x1xf32>
    %50 = vector.broadcast %49 : vector<8x1xf32> to vector<8x96xf32>
    %51 = vector.broadcast %6 : vector<1x96xf32> to vector<8x96xf32>
    %52 = arith.mulf %50, %51 : vector<8x96xf32>
    %cst_18 = arith.constant 3.125000e-02 : f32
    %53 = vector.broadcast %cst_18 : f32 to vector<8x1xf32>
    %54 = arith.mulf %36, %53 : vector<8x1xf32>
    %55 = vector.broadcast %54 : vector<8x1xf32> to vector<8x96xf32>
    %56 = vector.broadcast %8 : vector<1x96xf32> to vector<8x96xf32>
    %57 = arith.mulf %55, %56 : vector<8x96xf32>
    %58 = arith.addf %52, %57 : vector<8x96xf32>
    %59 = arith.mulf %47, %47 : vector<8x96xf32>
    %60 = arith.subf %58, %59 : vector<8x96xf32>
    %61 = arith.subf %19, %47 : vector<8x96xf32>
    %cst_19 = arith.constant 9.99999974E-6 : f32
    %62 = vector.broadcast %cst_19 : f32 to vector<8x96xf32>
    %63 = arith.addf %60, %62 : vector<8x96xf32>
    %64 = math.rsqrt %63 : vector<8x96xf32>
    %65 = arith.mulf %61, %64 : vector<8x96xf32>
    %66 = vector.broadcast %20 : vector<1x96xf32> to vector<8x96xf32>
    %67 = arith.mulf %65, %66 : vector<8x96xf32>
    %68 = vector.broadcast %21 : vector<1x96xf32> to vector<8x96xf32>
    %69 = arith.addf %67, %68 : vector<8x96xf32>
    %70 = arith.truncf %69 : vector<8x96xf32> to vector<8x96xbf16>
    %c0_20 = arith.constant 0 : index
    %c0_21 = arith.constant 0 : index
    %71 = vector.load %arg3[%c0_20, %c0_21] : memref<96x384xbf16, #tpu.memory_space<vmem>>, vector<96x384xbf16>
    %cst_22 = arith.constant dense<0.000000e+00> : vector<8x384xf32>
    %72 = tpu.matmul %70, %71, %cst_22 {dimension_numbers = #tpu.dot_dimension_numbers<[1], [0], [0], [1], [0, 0, 1, 1], [], []>} : vector<8x96xbf16>, vector<96x384xbf16>, vector<8x384xf32> -> vector<8x384xf32>
    %c2 = arith.constant 2 : index
    %c0_23 = arith.constant 0 : index
    %73 = vector.load %arg5[%c2, %c0_23] : memref<9x384xf32, #tpu.memory_space<vmem>>, vector<1x384xf32>
    %74 = vector.broadcast %73 : vector<1x384xf32> to vector<8x384xf32>
    %75 = arith.addf %72, %74 : vector<8x384xf32>
    %cst_24 = arith.constant 0.000000e+00 : f32
    %76 = vector.broadcast %cst_24 : f32 to vector<8x384xf32>
    %77 = arith.maximumf %75, %76 : vector<8x384xf32>
    %78 = arith.truncf %77 : vector<8x384xf32> to vector<8x384xbf16>
    %c96 = arith.constant 96 : index
    %c0_25 = arith.constant 0 : index
    %79 = vector.load %arg2[%c96, %c0_25] : memref<480x96xbf16, #tpu.memory_space<vmem>>, vector<384x96xbf16>
    %cst_26 = arith.constant dense<0.000000e+00> : vector<8x96xf32>
    %80 = tpu.matmul %78, %79, %cst_26 {dimension_numbers = #tpu.dot_dimension_numbers<[1], [0], [0], [1], [0, 0, 1, 1], [], []>} : vector<8x384xbf16>, vector<384x96xbf16>, vector<8x96xf32> -> vector<8x96xf32>
    %c3 = arith.constant 3 : index
    %c0_27 = arith.constant 0 : index
    %81 = vector.load %arg5[%c3, %c0_27] : memref<9x384xf32, #tpu.memory_space<vmem>>, vector<1x96xf32>
    %82 = vector.broadcast %81 : vector<1x96xf32> to vector<8x96xf32>
    %83 = arith.addf %80, %82 : vector<8x96xf32>
    %84 = arith.addf %69, %83 : vector<8x96xf32>
    %c6 = arith.constant 6 : index
    %c0_28 = arith.constant 0 : index
    %85 = vector.load %arg5[%c6, %c0_28] : memref<9x384xf32, #tpu.memory_space<vmem>>, vector<1x96xf32>
    %c7 = arith.constant 7 : index
    %c0_29 = arith.constant 0 : index
    %86 = vector.load %arg5[%c7, %c0_29] : memref<9x384xf32, #tpu.memory_space<vmem>>, vector<1x96xf32>
    %87 = arith.mulf %84, %84 : vector<8x96xf32>
    %cst_30 = arith.constant dense<0.000000e+00> : vector<8xf32>
    %88 = vector.multi_reduction <add>, %84, %cst_30 [1] : vector<8x96xf32> to vector<8xf32>
    %89 = vector.shape_cast %88 : vector<8xf32> to vector<8x1xf32>
    %cst_31 = arith.constant dense<0.000000e+00> : vector<8xf32>
    %90 = vector.multi_reduction <add>, %87, %cst_31 [1] : vector<8x96xf32> to vector<8xf32>
    %91 = vector.shape_cast %90 : vector<8xf32> to vector<8x1xf32>
    %92 = vector.broadcast %6 : vector<1x96xf32> to vector<8x96xf32>
    %93 = arith.mulf %84, %92 : vector<8x96xf32>
    %cst_32 = arith.constant dense<0.000000e+00> : vector<8xf32>
    %94 = vector.multi_reduction <add>, %93, %cst_32 [1] : vector<8x96xf32> to vector<8xf32>
    %95 = vector.shape_cast %94 : vector<8xf32> to vector<8x1xf32>
    %96 = vector.broadcast %6 : vector<1x96xf32> to vector<8x96xf32>
    %97 = arith.mulf %87, %96 : vector<8x96xf32>
    %cst_33 = arith.constant dense<0.000000e+00> : vector<8xf32>
    %98 = vector.multi_reduction <add>, %97, %cst_33 [1] : vector<8x96xf32> to vector<8xf32>
    %99 = vector.shape_cast %98 : vector<8xf32> to vector<8x1xf32>
    %100 = arith.subf %89, %95 : vector<8x1xf32>
    %101 = arith.subf %91, %99 : vector<8x1xf32>
    %cst_34 = arith.constant 1.562500e-02 : f32
    %102 = vector.broadcast %cst_34 : f32 to vector<8x1xf32>
    %103 = arith.mulf %95, %102 : vector<8x1xf32>
    %104 = vector.broadcast %103 : vector<8x1xf32> to vector<8x96xf32>
    %105 = vector.broadcast %6 : vector<1x96xf32> to vector<8x96xf32>
    %106 = arith.mulf %104, %105 : vector<8x96xf32>
    %cst_35 = arith.constant 3.125000e-02 : f32
    %107 = vector.broadcast %cst_35 : f32 to vector<8x1xf32>
    %108 = arith.mulf %100, %107 : vector<8x1xf32>
    %109 = vector.broadcast %108 : vector<8x1xf32> to vector<8x96xf32>
    %110 = vector.broadcast %8 : vector<1x96xf32> to vector<8x96xf32>
    %111 = arith.mulf %109, %110 : vector<8x96xf32>
    %112 = arith.addf %106, %111 : vector<8x96xf32>
    %cst_36 = arith.constant 1.562500e-02 : f32
    %113 = vector.broadcast %cst_36 : f32 to vector<8x1xf32>
    %114 = arith.mulf %99, %113 : vector<8x1xf32>
    %115 = vector.broadcast %114 : vector<8x1xf32> to vector<8x96xf32>
    %116 = vector.broadcast %6 : vector<1x96xf32> to vector<8x96xf32>
    %117 = arith.mulf %115, %116 : vector<8x96xf32>
    %cst_37 = arith.constant 3.125000e-02 : f32
    %118 = vector.broadcast %cst_37 : f32 to vector<8x1xf32>
    %119 = arith.mulf %101, %118 : vector<8x1xf32>
    %120 = vector.broadcast %119 : vector<8x1xf32> to vector<8x96xf32>
    %121 = vector.broadcast %8 : vector<1x96xf32> to vector<8x96xf32>
    %122 = arith.mulf %120, %121 : vector<8x96xf32>
    %123 = arith.addf %117, %122 : vector<8x96xf32>
    %124 = arith.mulf %112, %112 : vector<8x96xf32>
    %125 = arith.subf %123, %124 : vector<8x96xf32>
    %126 = arith.subf %84, %112 : vector<8x96xf32>
    %cst_38 = arith.constant 9.99999974E-6 : f32
    %127 = vector.broadcast %cst_38 : f32 to vector<8x96xf32>
    %128 = arith.addf %125, %127 : vector<8x96xf32>
    %129 = math.rsqrt %128 : vector<8x96xf32>
    %130 = arith.mulf %126, %129 : vector<8x96xf32>
    %131 = vector.broadcast %85 : vector<1x96xf32> to vector<8x96xf32>
    %132 = arith.mulf %130, %131 : vector<8x96xf32>
    %133 = vector.broadcast %86 : vector<1x96xf32> to vector<8x96xf32>
    %134 = arith.addf %132, %133 : vector<8x96xf32>
    %cst_39 = arith.constant dense<0.000000e+00> : vector<8xf32>
    %135 = vector.multi_reduction <add>, %134, %cst_39 [1] : vector<8x96xf32> to vector<8xf32>
    %136 = vector.shape_cast %135 : vector<8xf32> to vector<8x1xf32>
    %cst_40 = arith.constant 9.600000e+01 : f32
    %137 = vector.broadcast %cst_40 : f32 to vector<8x1xf32>
    %138 = arith.divf %136, %137 : vector<8x1xf32>
    %139 = arith.mulf %134, %134 : vector<8x96xf32>
    %cst_41 = arith.constant dense<0.000000e+00> : vector<8xf32>
    %140 = vector.multi_reduction <add>, %139, %cst_41 [1] : vector<8x96xf32> to vector<8xf32>
    %141 = vector.shape_cast %140 : vector<8xf32> to vector<8x1xf32>
    %cst_42 = arith.constant 9.600000e+01 : f32
    %142 = vector.broadcast %cst_42 : f32 to vector<8x1xf32>
    %143 = arith.divf %141, %142 : vector<8x1xf32>
    %144 = vector.broadcast %138 : vector<8x1xf32> to vector<8x96xf32>
    %145 = arith.subf %134, %144 : vector<8x96xf32>
    %146 = arith.mulf %138, %138 : vector<8x1xf32>
    %147 = arith.subf %143, %146 : vector<8x1xf32>
    %cst_43 = arith.constant 9.99999974E-6 : f32
    %148 = vector.broadcast %cst_43 : f32 to vector<8x1xf32>
    %149 = arith.addf %147, %148 : vector<8x1xf32>
    %150 = math.rsqrt %149 : vector<8x1xf32>
    %151 = vector.broadcast %150 : vector<8x1xf32> to vector<8x96xf32>
    %152 = arith.mulf %145, %151 : vector<8x96xf32>
    %153 = arith.truncf %152 : vector<8x96xf32> to vector<8x96xbf16>
    %c0_44 = arith.constant 0 : index
    %c0_45 = arith.constant 0 : index
    %154 = vector.load %arg4[%c0_44, %c0_45] : memref<96x128xbf16, #tpu.memory_space<vmem>>, vector<96x128xbf16>
    %cst_46 = arith.constant dense<0.000000e+00> : vector<8x128xf32>
    %155 = tpu.matmul %153, %154, %cst_46 {dimension_numbers = #tpu.dot_dimension_numbers<[1], [0], [0], [1], [0, 0, 1, 1], [], []>} : vector<8x96xbf16>, vector<96x128xbf16>, vector<8x128xf32> -> vector<8x128xf32>
    %c8 = arith.constant 8 : index
    %c0_47 = arith.constant 0 : index
    %156 = vector.load %arg5[%c8, %c0_47] : memref<9x384xf32, #tpu.memory_space<vmem>>, vector<1x128xf32>
    %157 = vector.broadcast %156 : vector<1x128xf32> to vector<8x128xf32>
    %158 = arith.addf %155, %157 : vector<8x128xf32>
    %c0_48 = arith.constant 0 : index
    %c0_49 = arith.constant 0 : index
    %159 = vector.load %arg6[%c0_48, %c0_49] : memref<8x128xf32, #tpu.memory_space<vmem>>, vector<8x128xf32>
    tpu.vector_store %arg6[%c0_48, %c0_49], %158 {strides = array<i32>} : memref<8x128xf32, #tpu.memory_space<vmem>>, vector<8x128xf32>,
    return
  }
  func.func @transform_0(%arg0: i32) -> (i32, i32) {
    %c0_i32 = arith.constant 0 : i32
    %c0_i32_0 = arith.constant 0 : i32
    return %arg0, %c0_i32 : i32, i32
  }
  func.func @transform_1(%arg0: i32) -> (i32, i32) {
    %c0_i32 = arith.constant 0 : i32
    %c0_i32_0 = arith.constant 0 : i32
    %c0_i32_1 = arith.constant 0 : i32
    return %c0_i32, %c0_i32_0 : i32, i32
  }
  func.func @transform_2(%arg0: i32) -> (i32, i32) {
    %c0_i32 = arith.constant 0 : i32
    %c0_i32_0 = arith.constant 0 : i32
    %c0_i32_1 = arith.constant 0 : i32
    return %c0_i32, %c0_i32_0 : i32, i32
  }
  func.func @transform_3(%arg0: i32) -> (i32, i32) {
    %c0_i32 = arith.constant 0 : i32
    %c0_i32_0 = arith.constant 0 : i32
    %c0_i32_1 = arith.constant 0 : i32
    return %c0_i32, %c0_i32_0 : i32, i32
  }
  func.func @transform_4(%arg0: i32) -> (i32, i32) {
    %c0_i32 = arith.constant 0 : i32
    %c0_i32_0 = arith.constant 0 : i32
    %c0_i32_1 = arith.constant 0 : i32
    return %c0_i32, %c0_i32_0 : i32, i32
  }
  func.func @transform_5(%arg0: i32) -> (i32, i32) {
    %c0_i32 = arith.constant 0 : i32
    %c0_i32_0 = arith.constant 0 : i32
    return %arg0, %c0_i32 : i32, i32
  }
}

</mosaic_0001>

<llo_original>
// kernel: tpu_custom_call.1
$region0: #{tpu_custom_call.1}
  #allocation0 [shape = 'u32[]', space=smem, size = 0x4, offset = 0x4, fixed_abs, tag = 'smem constant byte address 0x4 - core index']
  #allocation1 [shape = 'u32[144,128]{1,0:T(1,128)}', space=vmem, size = 0x12000, scoped, tag = 'internal scratch']
  %s0 = inlined_call_operand.vmem [shape: f32[8,48], index: 0, kind: input, shape index: {}]
  %s1 = inlined_call_operand.vmem [shape: bf16[480,96], index: 1, kind: input, shape index: {}]
  %s2 = inlined_call_operand.vmem [shape: bf16[96,384], index: 2, kind: input, shape index: {}]
  %s3 = inlined_call_operand.vmem [shape: bf16[96,128], index: 3, kind: input, shape index: {}]
  %s4 = inlined_call_operand.vmem [shape: f32[9,384], index: 4, kind: input, shape index: {}]
  %s5 = inlined_call_operand.hbm [shape: f32[8,128], index: 5, kind: output, shape index: {}]
  %s6 = sld [smem:[#allocation0]]
  $region30: #{tpu_custom_call.1} parent=0
    _
  %s8 = ssub.s32 1, %s6
  %s9 = scalar_select 0, %s8, %s6
  $region1: #{tpu_custom_call.1} parent=0
    #allocation2 [shape = 'u8[4096]{0}', space=vmem, size = 0x1000, scoped, tag = 'output window, operand 0, single buffered']
    #allocation3 [shape = 's32[1]{0}', space=sflag, size = 0x4, scoped, tag = 'scoped memory for tpu_custom_call.1']
    %10 = vsyncpa [#allocation3], 0
    // Predicated region
    $region2: #{tpu_custom_call.1} parent=1 // pred_check
      _
    $region3: #{tpu_custom_call.1} parent=1 // pred_check_branch
      %12 = sbr.rel (0) target = $region5
    $region4: #{tpu_custom_call.1} parent=1 // pred_region
      _
    $region5: #{tpu_custom_call.1} parent=1 // pred_fallthru
      _
    // Predicated region
    $region6: #{tpu_custom_call.1} parent=1 // pred_check
      _
    $region7: #{tpu_custom_call.1} parent=1 // pred_check_branch
      %14 = sbr.rel (0) target = $region9
    $region8: #{tpu_custom_call.1} parent=1 // pred_region
      _
    $region9: #{tpu_custom_call.1} parent=1 // pred_fallthru
      _
    // Predicated region
    $region10: #{tpu_custom_call.1} parent=1 // pred_check
      _
    $region11: #{tpu_custom_call.1} parent=1 // pred_check_branch
      %16 = sbr.rel (0) target = $region13
    $region12: #{tpu_custom_call.1} parent=1 // pred_region
      _
    $region13: #{tpu_custom_call.1} parent=1 // pred_fallthru
      _
    // Predicated region
    $region14: #{tpu_custom_call.1} parent=1 // pred_check
      _
    $region15: #{tpu_custom_call.1} parent=1 // pred_check_branch
      %18 = sbr.rel (0) target = $region17
    $region16: #{tpu_custom_call.1} parent=1 // pred_region
      _
    $region17: #{tpu_custom_call.1} parent=1 // pred_fallthru
      _
    // Predicated region
    $region18: #{tpu_custom_call.1} parent=1 // pred_check
      _
    $region19: #{tpu_custom_call.1} parent=1 // pred_check_branch
      %20 = sbr.rel (0) target = $region21
    $region20: #{tpu_custom_call.1} parent=1 // pred_region
      _
    $region21: #{tpu_custom_call.1} parent=1 // pred_fallthru
      _
    %v22 = vld [vmem:[%s0] sm:$0xff]
    %v23 = vpack.c.bf16 %v22, %v22
    %v24 = vlaneseq
    %v25 = vand.u32 %v24, 127
    %vm26 = vcmp.lt.s32.totalorder %v25, 64
    %v27 = vsel %vm26, 1, 0
    %v28 = vcvt.s32.f32 %v27
    %v29 = vsub.f32 1.0, %v28
    %v30 = vld [vmem:[%s1] sm:$0xf]
    %v31 = vld [vmem:[%s1 + $0x4] sm:$0xf]
    %v32 = vld [vmem:[%s1 + $0x8] sm:$0xf]
    %v33 = vld [vmem:[%s1 + $0xc] sm:$0xf]
    %v34 = vld [vmem:[%s1 + $0x10] sm:$0xf]
    %v35 = vld [vmem:[%s1 + $0x14] sm:$0xf]
    %v36 = vld [vmem:[%s4] ss:$0 sm:$0xff]
    %v43 = vunpack.c.l.b16 %v30
    %v44 = vunpack.c.l.b16 %v31
    %v45 = vunpack.c.l.b16 %v32
    %v46 = vunpack.c.l.b16 %v33
    %v47 = vunpack.c.l.b16 %v34
    %v48 = vunpack.c.l.b16 %v35
    %v49 = vpack.c.b16 %v44, %v43
    %v50 = vpack.c.b16 %v46, %v45
    %v51 = vpack.c.b16 %v48, %v47
    %vm55 = vcmask 392192
    %v57 = vsel %vm55, %v23, 0
    %59 = vmatprep.subr.bf16.mxu0 0
    %60 = vmatpush1.bf16.msra.mxu0 %v49
    %61 = vmatprep.subr.bf16.mxu0 0
    %62 = vmatpush1.bf16.msra.mxu0 %v50
    %63 = vmatprep.subr.bf16.mxu0 0
    %64 = vmatpush1.bf16.msra.mxu0 %v51
    %65 = vmatprep.subr.bf16.mxu0 0
    %66 = vmatpush1.bf16.msra.mxu0 0
    %67 = vmatprep.subr.bf16.mxu0 0
    %68 = vmatpush1.bf16.msra.mxu0 0
    %69 = vmatprep.subr.bf16.mxu0 0
    %70 = vmatpush1.bf16.msra.mxu0 0
    %71 = vmatprep.subr.bf16.mxu0 0
    %72 = vmatpush1.bf16.msra.mxu0 0
    %73 = vmatprep.subr.bf16.mxu0 0
    %74 = vmatpush1.bf16.msra.mxu0 0
    %75 = vmatprep.subr.bf16.mxu0 0
    %76 = vmatpush1.bf16.msra.mxu0 0
    %77 = vmatprep.subr.bf16.mxu0 0
    %78 = vmatpush1.bf16.msra.mxu0 0
    %79 = vmatprep.subr.bf16.mxu0 0
    %80 = vmatpush1.bf16.msra.mxu0 0
    %81 = vmatprep.subr.bf16.mxu0 0
    %82 = vmatpush1.bf16.msra.mxu0 0
    %83 = vmatprep.subr.bf16.mxu0 0
    %84 = vmatpush1.bf16.msra.mxu0 0
    %85 = vmatprep.subr.bf16.mxu0 0
    %86 = vmatpush1.bf16.msra.mxu0 0
    %87 = vmatprep.subr.bf16.mxu0 0
    %88 = vmatpush1.bf16.msra.mxu0 0
    %89 = vmatprep.subr.bf16.mxu0 0
    %90 = vmatpush1.bf16.msra.mxu0 0
    %91 = vmatprep.mubr.bf16.mxu0 0
    %92 = vmatmul.mubr.bf16.gmra.mrb[0].mxu0 %v57
    %v93 = vpop.f32.mrb[0].mxu0
    %v94 = vadd.f32 %v36, %v93
    %v95 = vpop.f32.mrb[0].mxu0
    %v96 = vpop.f32.mrb[0].mxu0
    %v97 = vpop.f32.mrb[0].mxu0
    %98 = vdwg.mxu0
    %v99 = vld [vmem:[%s1 + $0x18] sm:$0xf]
    %v100 = vld [vmem:[%s1 + $0x1c] sm:$0xf]
    %v101 = vld [vmem:[%s1 + $0x20] sm:$0xf]
    %v102 = vld [vmem:[%s1 + $0x24] sm:$0xf]
    %v103 = vld [vmem:[%s1 + $0x28] sm:$0xf]
    %v104 = vld [vmem:[%s1 + $0x2c] sm:$0xf]
    %v105 = vld [vmem:[%s4 + $0x1] ss:$0 sm:$0xff]
    %v112 = vunpack.c.l.b16 %v99
    %v113 = vunpack.c.l.b16 %v100
    %v114 = vunpack.c.l.b16 %v101
    %v115 = vunpack.c.l.b16 %v102
    %v116 = vunpack.c.l.b16 %v103
    %v117 = vunpack.c.l.b16 %v104
    %v118 = vpack.c.b16 %v113, %v112
    %v119 = vpack.c.b16 %v115, %v114
    %v120 = vpack.c.b16 %v117, %v116
    %124 = vmatprep.subr.bf16.mxu0 0
    %125 = vmatpush1.bf16.msra.mxu0 %v118
    %126 = vmatprep.subr.bf16.mxu0 0
    %127 = vmatpush1.bf16.msra.mxu0 %v119
    %128 = vmatprep.subr.bf16.mxu0 0
    %129 = vmatpush1.bf16.msra.mxu0 %v120
    %130 = vmatprep.subr.bf16.mxu0 0
    %131 = vmatpush1.bf16.msra.mxu0 0
    %132 = vmatprep.subr.bf16.mxu0 0
    %133 = vmatpush1.bf16.msra.mxu0 0
    %134 = vmatprep.subr.bf16.mxu0 0
    %135 = vmatpush1.bf16.msra.mxu0 0
    %136 = vmatprep.subr.bf16.mxu0 0
    %137 = vmatpush1.bf16.msra.mxu0 0
    %138 = vmatprep.subr.bf16.mxu0 0
    %139 = vmatpush1.bf16.msra.mxu0 0
    %140 = vmatprep.subr.bf16.mxu0 0
    %141 = vmatpush1.bf16.msra.mxu0 0
    %142 = vmatprep.subr.bf16.mxu0 0
    %143 = vmatpush1.bf16.msra.mxu0 0
    %144 = vmatprep.subr.bf16.mxu0 0
    %145 = vmatpush1.bf16.msra.mxu0 0
    %146 = vmatprep.subr.bf16.mxu0 0
    %147 = vmatpush1.bf16.msra.mxu0 0
    %148 = vmatprep.subr.bf16.mxu0 0
    %149 = vmatpush1.bf16.msra.mxu0 0
    %150 = vmatprep.subr.bf16.mxu0 0
    %151 = vmatpush1.bf16.msra.mxu0 0
    %152 = vmatprep.subr.bf16.mxu0 0
    %153 = vmatpush1.bf16.msra.mxu0 0
    %154 = vmatprep.subr.bf16.mxu0 0
    %155 = vmatpush1.bf16.msra.mxu0 0
    %156 = vmatprep.mubr.bf16.mxu0 0
    %157 = vmatmul.mubr.bf16.gmra.mrb[0].mxu0 %v57
    %v158 = vpop.f32.mrb[0].mxu0
    %v159 = vadd.f32 %v105, %v158
    %v160 = vpop.f32.mrb[0].mxu0
    %v161 = vpop.f32.mrb[0].mxu0
    %v162 = vpop.f32.mrb[0].mxu0
    %163 = vdwg.mxu0
    %v164 = vadd.f32 %v94, %v159
    %v165 = vld [vmem:[%s4 + $0x4] ss:$0 sm:$0xff]
    %v166 = vld [vmem:[%s4 + $0x5] ss:$0 sm:$0xff]
    %v167 = vmul.f32 %v164, %v164
    %vm168 = vcmask 785408
    %v169 = vsel %vm168, %v164, 0.0
    %170 = vadd.xlane.f32.xlu0 %v169
    %v171 = vpop.xlane.xlu0 %170
    %v172 = vsel %vm168, %v167, 0.0
    %173 = vadd.xlane.f32.xlu0 %v172
    %v174 = vpop.xlane.xlu0 %173
    %v175 = vmul.f32 %v164, %v28
    %v176 = vsel %vm168, %v175, 0.0
    %177 = vadd.xlane.f32.xlu0 %v176
    %v178 = vpop.xlane.xlu0 %177
    %v179 = vmul.f32 %v167, %v28
    %v180 = vsel %vm168, %v179, 0.0
    %181 = vadd.xlane.f32.xlu0 %v180
    %v182 = vpop.xlane.xlu0 %181
    %v183 = vsub.f32 %v171, %v178
    %v184 = vsub.f32 %v174, %v182
    %v185 = vmul.f32 %v178, 0.015625
    %v186 = vmul.f32 %v185, %v28
    %v187 = vmul.f32 %v183, 0.03125
    %v188 = vmul.f32 %v187, %v29
    %v189 = vadd.f32 %v186, %v188
    %v190 = vmul.f32 %v182, 0.015625
    %v191 = vmul.f32 %v190, %v28
    %v192 = vmul.f32 %v184, 0.03125
    %v193 = vmul.f32 %v192, %v29
    %v194 = vadd.f32 %v191, %v193
    %v195 = vmul.f32 %v189, %v189
    %v196 = vsub.f32 %v194, %v195
    %v197 = vsub.f32 %v164, %v189
    %v198 = vadd.f32 %v196, 1e-05
    %v199 = vrsqrt.pop %v198
    %v200 = vmul.f32 %v197, %v199
    %v201 = vmul.f32 %v200, %v165
    %v202 = vadd.f32 %v201, %v166
    %v203 = vpack.c.bf16 %v202, %v202
    %v204 = vld [vmem:[%s2] sm:$0xff]
    %v205 = vld [vmem:[%s2 + $0x8] sm:$0xf]
    %v206 = vld [vmem:[%s2 + $0xc] sm:$0xff]
    %v207 = vld [vmem:[%s2 + $0x14] sm:$0xf]
    %v208 = vld [vmem:[%s2 + $0x18] sm:$0xff]
    %v209 = vld [vmem:[%s2 + $0x20] sm:$0xf]
    %v210 = vld [vmem:[%s2 + $0x24] sm:$0xff]
    %v211 = vld [vmem:[%s2 + $0x2c] sm:$0xf]
    %v212 = vld [vmem:[%s2 + $0x30] sm:$0xff]
    %v213 = vld [vmem:[%s2 + $0x38] sm:$0xf]
    %v214 = vld [vmem:[%s2 + $0x3c] sm:$0xff]
    %v215 = vld [vmem:[%s2 + $0x44] sm:$0xf]
    %v216 = vld [vmem:[%s2 + $0x48] sm:$0xff]
    %v217 = vld [vmem:[%s2 + $0x50] sm:$0xf]
    %v218 = vld [vmem:[%s2 + $0x54] sm:$0xff]
    %v219 = vld [vmem:[%s2 + $0x5c] sm:$0xf]
    %v220 = vld [vmem:[%s2 + $0x60] sm:$0xff]
    %v221 = vld [vmem:[%s2 + $0x68] sm:$0xf]
    %v222 = vld [vmem:[%s2 + $0x6c] sm:$0xff]
    %v223 = vld [vmem:[%s2 + $0x74] sm:$0xf]
    %v224 = vld [vmem:[%s2 + $0x78] sm:$0xff]
    %v225 = vld [vmem:[%s2 + $0x80] sm:$0xf]
    %v226 = vld [vmem:[%s2 + $0x84] sm:$0xff]
    %v227 = vld [vmem:[%s2 + $0x8c] sm:$0xf]
    %s228 = scalar_lea.vmem %s4, 2
    %v229 = vld [vmem:[%s228] ss:$8 sm:$0x7]
    %v231 = vlaneseq
    %v232 = vshrl.u32 %v231, 7
    %v233 = vsub.s32 0, %v232
    %v234 = vrot.slane %v229, %v233
    %v235 = vlaneseq
    %v236 = vshrl.u32 %v235, 7
    %v237 = vsub.s32 1, %v236
    %v238 = vrot.slane %v229, %v237
    %v239 = vlaneseq
    %v240 = vshrl.u32 %v239, 7
    %v241 = vsub.s32 2, %v240
    %v242 = vrot.slane %v229, %v241
    %v270 = vunpack.c.l.b16 %v204
    %v271 = vunpack.c.h.b16 %v204
    %v272 = vunpack.c.l.b16 %v205
    %v273 = vunpack.c.l.b16 %v206
    %v274 = vunpack.c.h.b16 %v206
    %v275 = vunpack.c.l.b16 %v207
    %v276 = vunpack.c.l.b16 %v208
    %v277 = vunpack.c.h.b16 %v208
    %v278 = vunpack.c.l.b16 %v209
    %v279 = vunpack.c.l.b16 %v210
    %v280 = vunpack.c.h.b16 %v210
    %v281 = vunpack.c.l.b16 %v211
    %v282 = vunpack.c.l.b16 %v212
    %v283 = vunpack.c.h.b16 %v212
    %v284 = vunpack.c.l.b16 %v213
    %v285 = vunpack.c.l.b16 %v214
    %v286 = vunpack.c.h.b16 %v214
    %v287 = vunpack.c.l.b16 %v215
    %v288 = vunpack.c.l.b16 %v216
    %v289 = vunpack.c.h.b16 %v216
    %v290 = vunpack.c.l.b16 %v217
    %v291 = vunpack.c.l.b16 %v218
    %v292 = vunpack.c.h.b16 %v218
    %v293 = vunpack.c.l.b16 %v219
    %v294 = vunpack.c.l.b16 %v220
    %v295 = vunpack.c.h.b16 %v220
    %v296 = vunpack.c.l.b16 %v221
    %v297 = vunpack.c.l.b16 %v222
    %v298 = vunpack.c.h.b16 %v222
    %v299 = vunpack.c.l.b16 %v223
    %v300 = vunpack.c.l.b16 %v224
    %v301 = vunpack.c.h.b16 %v224
    %v302 = vunpack.c.l.b16 %v225
    %v303 = vunpack.c.l.b16 %v226
    %v304 = vunpack.c.h.b16 %v226
    %v305 = vunpack.c.l.b16 %v227
    %v306 = vpack.c.b16 %v273, %v270
    %v307 = vpack.c.b16 %v274, %v271
    %v308 = vpack.c.b16 %v275, %v272
    %v309 = vpack.c.b16 %v279, %v276
    %v310 = vpack.c.b16 %v280, %v277
    %v311 = vpack.c.b16 %v281, %v278
    %v312 = vpack.c.b16 %v285, %v282
    %v313 = vpack.c.b16 %v286, %v283
    %v314 = vpack.c.b16 %v287, %v284
    %v315 = vpack.c.b16 %v291, %v288
    %v316 = vpack.c.b16 %v292, %v289
    %v317 = vpack.c.b16 %v293, %v290
    %v318 = vpack.c.b16 %v297, %v294
    %v319 = vpack.c.b16 %v298, %v295
    %v320 = vpack.c.b16 %v299, %v296
    %v321 = vpack.c.b16 %v303, %v300
    %v322 = vpack.c.b16 %v304, %v301
    %v323 = vpack.c.b16 %v305, %v302
    %v343 = vsel %vm168, %v203, 0
    %345 = vmatprep.subr.bf16.mxu0 %v307
    %346 = vmatpush1.bf16.msra.mxu0 %v306
    %347 = vmatprep.subr.bf16.mxu0 %v310
    %348 = vmatpush1.bf16.msra.mxu0 %v309
    %349 = vmatprep.subr.bf16.mxu0 %v313
    %350 = vmatpush1.bf16.msra.mxu0 %v312
    %351 = vmatprep.subr.bf16.mxu0 %v316
    %352 = vmatpush1.bf16.msra.mxu0 %v315
    %353 = vmatprep.subr.bf16.mxu0 %v319
    %354 = vmatpush1.bf16.msra.mxu0 %v318
    %355 = vmatprep.subr.bf16.mxu0 %v322
    %356 = vmatpush1.bf16.msra.mxu0 %v321
    %357 = vmatprep.subr.bf16.mxu0 0
    %358 = vmatpush1.bf16.msra.mxu0 0
    %359 = vmatprep.subr.bf16.mxu0 0
    %360 = vmatpush1.bf16.msra.mxu0 0
    %361 = vmatprep.subr.bf16.mxu0 0
    %362 = vmatpush1.bf16.msra.mxu0 0
    %363 = vmatprep.subr.bf16.mxu0 0
    %364 = vmatpush1.bf16.msra.mxu0 0
    %365 = vmatprep.subr.bf16.mxu0 0
    %366 = vmatpush1.bf16.msra.mxu0 0
    %367 = vmatprep.subr.bf16.mxu0 0
    %368 = vmatpush1.bf16.msra.mxu0 0
    %369 = vmatprep.subr.bf16.mxu0 0
    %370 = vmatpush1.bf16.msra.mxu0 0
    %371 = vmatprep.subr.bf16.mxu0 0
    %372 = vmatpush1.bf16.msra.mxu0 0
    %373 = vmatprep.subr.bf16.mxu0 0
    %374 = vmatpush1.bf16.msra.mxu0 0
    %375 = vmatprep.subr.bf16.mxu0 0
    %376 = vmatpush1.bf16.msra.mxu0 0
    %377 = vmatprep.mubr.bf16.mxu0 0
    %378 = vmatmul.mubr.bf16.gmra.mrb[0].mxu0 %v343
    %v379 = vpop.f32.mrb[0].mxu0
    %v380 = vadd.f32 %v234, %v379
    %v381 = vpop.f32.mrb[0].mxu0
    %v382 = vadd.f32 %v238, %v381
    %v383 = vpop.f32.mrb[0].mxu0
    %v384 = vpop.f32.mrb[0].mxu0
    %385 = vdwg.mxu0
    %386 = vmatprep.subr.bf16.mxu0 0
    %387 = vmatpush1.bf16.msra.mxu0 %v308
    %388 = vmatprep.subr.bf16.mxu0 0
    %389 = vmatpush1.bf16.msra.mxu0 %v311
    %390 = vmatprep.subr.bf16.mxu0 0
    %391 = vmatpush1.bf16.msra.mxu0 %v314
    %392 = vmatprep.subr.bf16.mxu0 0
    %393 = vmatpush1.bf16.msra.mxu0 %v317
    %394 = vmatprep.subr.bf16.mxu0 0
    %395 = vmatpush1.bf16.msra.mxu0 %v320
    %396 = vmatprep.subr.bf16.mxu0 0
    %397 = vmatpush1.bf16.msra.mxu0 %v323
    %398 = vmatprep.subr.bf16.mxu0 0
    %399 = vmatpush1.bf16.msra.mxu0 0
    %400 = vmatprep.subr.bf16.mxu0 0
    %401 = vmatpush1.bf16.msra.mxu0 0
    %402 = vmatprep.subr.bf16.mxu0 0
    %403 = vmatpush1.bf16.msra.mxu0 0
    %404 = vmatprep.subr.bf16.mxu0 0
    %405 = vmatpush1.bf16.msra.mxu0 0
    %406 = vmatprep.subr.bf16.mxu0 0
    %407 = vmatpush1.bf16.msra.mxu0 0
    %408 = vmatprep.subr.bf16.mxu0 0
    %409 = vmatpush1.bf16.msra.mxu0 0
    %410 = vmatprep.subr.bf16.mxu0 0
    %411 = vmatpush1.bf16.msra.mxu0 0
    %412 = vmatprep.subr.bf16.mxu0 0
    %413 = vmatpush1.bf16.msra.mxu0 0
    %414 = vmatprep.subr.bf16.mxu0 0
    %415 = vmatpush1.bf16.msra.mxu0 0
    %416 = vmatprep.subr.bf16.mxu0 0
    %417 = vmatpush1.bf16.msra.mxu0 0
    %418 = vmatprep.mubr.bf16.mxu0 0
    %419 = vmatmul.mubr.bf16.gmra.mrb[0].mxu0 %v343
    %v420 = vpop.f32.mrb[0].mxu0
    %v421 = vadd.f32 %v242, %v420
    %v422 = vpop.f32.mrb[0].mxu0
    %v423 = vpop.f32.mrb[0].mxu0
    %v424 = vpop.f32.mrb[0].mxu0
    %425 = vdwg.mxu0
    %v426 = vmax.f32 %v380, 0.0
    %v427 = vmax.f32 %v382, 0.0
    %v428 = vmax.f32 %v421, 0.0
    %v429 = vpack.c.bf16 %v426, %v426
    %v430 = vpack.c.bf16 %v427, %v427
    %v431 = vpack.c.bf16 %v428, %v428
    %v432 = vld [vmem:[%s1 + $0x30] sm:$0xf]
    %v433 = vld [vmem:[%s1 + $0x34] sm:$0xf]
    %v434 = vld [vmem:[%s1 + $0x38] sm:$0xf]
    %v435 = vld [vmem:[%s1 + $0x3c] sm:$0xf]
    %v436 = vld [vmem:[%s1 + $0x40] sm:$0xf]
    %v437 = vld [vmem:[%s1 + $0x44] sm:$0xf]
    %v438 = vld [vmem:[%s1 + $0x48] sm:$0xf]
    %v439 = vld [vmem:[%s1 + $0x4c] sm:$0xf]
    %v440 = vld [vmem:[%s1 + $0x50] sm:$0xf]
    %v441 = vld [vmem:[%s1 + $0x54] sm:$0xf]
    %v442 = vld [vmem:[%s1 + $0x58] sm:$0xf]
    %v443 = vld [vmem:[%s1 + $0x5c] sm:$0xf]
    %v444 = vld [vmem:[%s1 + $0x60] sm:$0xf]
    %v445 = vld [vmem:[%s1 + $0x64] sm:$0xf]
    %v446 = vld [vmem:[%s1 + $0x68] sm:$0xf]
    %v447 = vld [vmem:[%s1 + $0x6c] sm:$0xf]
    %v448 = vld [vmem:[%s1 + $0x70] sm:$0xf]
    %v449 = vld [vmem:[%s1 + $0x74] sm:$0xf]
    %v450 = vld [vmem:[%s1 + $0x78] sm:$0xf]
    %v451 = vld [vmem:[%s1 + $0x7c] sm:$0xf]
    %v452 = vld [vmem:[%s1 + $0x80] sm:$0xf]
    %v453 = vld [vmem:[%s1 + $0x84] sm:$0xf]
    %v454 = vld [vmem:[%s1 + $0x88] sm:$0xf]
    %v455 = vld [vmem:[%s1 + $0x8c] sm:$0xf]
    %v456 = vld [vmem:[%s1 + $0x90] sm:$0xf]
    %v457 = vld [vmem:[%s1 + $0x94] sm:$0xf]
    %v458 = vld [vmem:[%s1 + $0x98] sm:$0xf]
    %v459 = vld [vmem:[%s1 + $0x9c] sm:$0xf]
    %v460 = vld [vmem:[%s1 + $0xa0] sm:$0xf]
    %v461 = vld [vmem:[%s1 + $0xa4] sm:$0xf]
    %v462 = vld [vmem:[%s1 + $0xa8] sm:$0xf]
    %v463 = vld [vmem:[%s1 + $0xac] sm:$0xf]
    %v464 = vld [vmem:[%s1 + $0xb0] sm:$0xf]
    %v465 = vld [vmem:[%s1 + $0xb4] sm:$0xf]
    %v466 = vld [vmem:[%s1 + $0xb8] sm:$0xf]
    %v467 = vld [vmem:[%s1 + $0xbc] sm:$0xf]
    %v468 = vld [vmem:[%s1 + $0xc0] sm:$0xf]
    %v469 = vld [vmem:[%s1 + $0xc4] sm:$0xf]
    %v470 = vld [vmem:[%s1 + $0xc8] sm:$0xf]
    %v471 = vld [vmem:[%s1 + $0xcc] sm:$0xf]
    %v472 = vld [vmem:[%s1 + $0xd0] sm:$0xf]
    %v473 = vld [vmem:[%s1 + $0xd4] sm:$0xf]
    %v474 = vld [vmem:[%s1 + $0xd8] sm:$0xf]
    %v475 = vld [vmem:[%s1 + $0xdc] sm:$0xf]
    %v476 = vld [vmem:[%s1 + $0xe0] sm:$0xf]
    %v477 = vld [vmem:[%s1 + $0xe4] sm:$0xf]
    %v478 = vld [vmem:[%s1 + $0xe8] sm:$0xf]
    %v479 = vld [vmem:[%s1 + $0xec] sm:$0xf]
    %v480 = vld [vmem:[%s4 + $0x3] ss:$0 sm:$0xff]
    %v529 = vunpack.c.l.b16 %v432
    %v530 = vunpack.c.l.b16 %v433
    %v531 = vunpack.c.l.b16 %v434
    %v532 = vunpack.c.l.b16 %v435
    %v533 = vunpack.c.l.b16 %v436
    %v534 = vunpack.c.l.b16 %v437
    %v535 = vunpack.c.l.b16 %v438
    %v536 = vunpack.c.l.b16 %v439
    %v537 = vunpack.c.l.b16 %v440
    %v538 = vunpack.c.l.b16 %v441
    %v539 = vunpack.c.l.b16 %v442
    %v540 = vunpack.c.l.b16 %v443
    %v541 = vunpack.c.l.b16 %v444
    %v542 = vunpack.c.l.b16 %v445
    %v543 = vunpack.c.l.b16 %v446
    %v544 = vunpack.c.l.b16 %v447
    %v545 = vunpack.c.l.b16 %v448
    %v546 = vunpack.c.l.b16 %v449
    %v547 = vunpack.c.l.b16 %v450
    %v548 = vunpack.c.l.b16 %v451
    %v549 = vunpack.c.l.b16 %v452
    %v550 = vunpack.c.l.b16 %v453
    %v551 = vunpack.c.l.b16 %v454
    %v552 = vunpack.c.l.b16 %v455
    %v553 = vunpack.c.l.b16 %v456
    %v554 = vunpack.c.l.b16 %v457
    %v555 = vunpack.c.l.b16 %v458
    %v556 = vunpack.c.l.b16 %v459
    %v557 = vunpack.c.l.b16 %v460
    %v558 = vunpack.c.l.b16 %v461
    %v559 = vunpack.c.l.b16 %v462
    %v560 = vunpack.c.l.b16 %v463
    %v561 = vunpack.c.l.b16 %v464
    %v562 = vunpack.c.l.b16 %v465
    %v563 = vunpack.c.l.b16 %v466
    %v564 = vunpack.c.l.b16 %v467
    %v565 = vunpack.c.l.b16 %v468
    %v566 = vunpack.c.l.b16 %v469
    %v567 = vunpack.c.l.b16 %v470
    %v568 = vunpack.c.l.b16 %v471
    %v569 = vunpack.c.l.b16 %v472
    %v570 = vunpack.c.l.b16 %v473
    %v571 = vunpack.c.l.b16 %v474
    %v572 = vunpack.c.l.b16 %v475
    %v573 = vunpack.c.l.b16 %v476
    %v574 = vunpack.c.l.b16 %v477
    %v575 = vunpack.c.l.b16 %v478
    %v576 = vunpack.c.l.b16 %v479
    %v577 = vpack.c.b16 %v530, %v529
    %v578 = vpack.c.b16 %v532, %v531
    %v579 = vpack.c.b16 %v534, %v533
    %v580 = vpack.c.b16 %v536, %v535
    %v581 = vpack.c.b16 %v538, %v537
    %v582 = vpack.c.b16 %v540, %v539
    %v583 = vpack.c.b16 %v542, %v541
    %v584 = vpack.c.b16 %v544, %v543
    %v585 = vpack.c.b16 %v546, %v545
    %v586 = vpack.c.b16 %v548, %v547
    %v587 = vpack.c.b16 %v550, %v549
    %v588 = vpack.c.b16 %v552, %v551
    %v589 = vpack.c.b16 %v554, %v553
    %v590 = vpack.c.b16 %v556, %v555
    %v591 = vpack.c.b16 %v558, %v557
    %v592 = vpack.c.b16 %v560, %v559
    %v593 = vpack.c.b16 %v562, %v561
    %v594 = vpack.c.b16 %v564, %v563
    %v595 = vpack.c.b16 %v566, %v565
    %v596 = vpack.c.b16 %v568, %v567
    %v597 = vpack.c.b16 %v570, %v569
    %v598 = vpack.c.b16 %v572, %v571
    %v599 = vpack.c.b16 %v574, %v573
    %v600 = vpack.c.b16 %v576, %v575
    %625 = vmatprep.subr.bf16.mxu0 0
    %626 = vmatpush1.bf16.msra.mxu0 %v577
    %627 = vmatprep.subr.bf16.mxu0 0
    %628 = vmatpush1.bf16.msra.mxu0 %v578
    %629 = vmatprep.subr.bf16.mxu0 0
    %630 = vmatpush1.bf16.msra.mxu0 %v579
    %631 = vmatprep.subr.bf16.mxu0 0
    %632 = vmatpush1.bf16.msra.mxu0 %v580
    %633 = vmatprep.subr.bf16.mxu0 0
    %634 = vmatpush1.bf16.msra.mxu0 %v581
    %635 = vmatprep.subr.bf16.mxu0 0
    %636 = vmatpush1.bf16.msra.mxu0 %v582
    %637 = vmatprep.subr.bf16.mxu0 0
    %638 = vmatpush1.bf16.msra.mxu0 %v583
    %639 = vmatprep.subr.bf16.mxu0 0
    %640 = vmatpush1.bf16.msra.mxu0 %v584
    %641 = vmatprep.subr.bf16.mxu0 0
    %642 = vmatpush1.bf16.msra.mxu0 %v585
    %643 = vmatprep.subr.bf16.mxu0 0
    %644 = vmatpush1.bf16.msra.mxu0 %v586
    %645 = vmatprep.subr.bf16.mxu0 0
    %646 = vmatpush1.bf16.msra.mxu0 %v587
    %647 = vmatprep.subr.bf16.mxu0 0
    %648 = vmatpush1.bf16.msra.mxu0 %v588
    %649 = vmatprep.subr.bf16.mxu0 0
    %650 = vmatpush1.bf16.msra.mxu0 %v589
    %651 = vmatprep.subr.bf16.mxu0 0
    %652 = vmatpush1.bf16.msra.mxu0 %v590
    %653 = vmatprep.subr.bf16.mxu0 0
    %654 = vmatpush1.bf16.msra.mxu0 %v591
    %655 = vmatprep.subr.bf16.mxu0 0
    %656 = vmatpush1.bf16.msra.mxu0 %v592
    %657 = vmatprep.mubr.bf16.mxu0 %v430
    %658 = vmatmul.mubr.bf16.gmra.mrb[0].mxu0 %v429
    %v659 = vpop.f32.mrb[0].mxu0
    %v660 = vadd.f32 %v480, %v659
    %v661 = vpop.f32.mrb[0].mxu0
    %v662 = vpop.f32.mrb[0].mxu0
    %v663 = vpop.f32.mrb[0].mxu0
    %664 = vdwg.mxu0
    %665 = vmatprep.subr.bf16.mxu0 0
    %666 = vmatpush1.bf16.msra.mxu0 %v593
    %667 = vmatprep.subr.bf16.mxu0 0
    %668 = vmatpush1.bf16.msra.mxu0 %v594
    %669 = vmatprep.subr.bf16.mxu0 0
    %670 = vmatpush1.bf16.msra.mxu0 %v595
    %671 = vmatprep.subr.bf16.mxu0 0
    %672 = vmatpush1.bf16.msra.mxu0 %v596
    %673 = vmatprep.subr.bf16.mxu0 0
    %674 = vmatpush1.bf16.msra.mxu0 %v597
    %675 = vmatprep.subr.bf16.mxu0 0
    %676 = vmatpush1.bf16.msra.mxu0 %v598
    %677 = vmatprep.subr.bf16.mxu0 0
    %678 = vmatpush1.bf16.msra.mxu0 %v599
    %679 = vmatprep.subr.bf16.mxu0 0
    %680 = vmatpush1.bf16.msra.mxu0 %v600
    %681 = vmatprep.subr.bf16.mxu0 0
    %682 = vmatpush1.bf16.msra.mxu0 0
    %683 = vmatprep.subr.bf16.mxu0 0
    %684 = vmatpush1.bf16.msra.mxu0 0
    %685 = vmatprep.subr.bf16.mxu0 0
    %686 = vmatpush1.bf16.msra.mxu0 0
    %687 = vmatprep.subr.bf16.mxu0 0
    %688 = vmatpush1.bf16.msra.mxu0 0
    %689 = vmatprep.subr.bf16.mxu0 0
    %690 = vmatpush1.bf16.msra.mxu0 0
    %691 = vmatprep.subr.bf16.mxu0 0
    %692 = vmatpush1.bf16.msra.mxu0 0
    %693 = vmatprep.subr.bf16.mxu0 0
    %694 = vmatpush1.bf16.msra.mxu0 0
    %695 = vmatprep.subr.bf16.mxu0 0
    %696 = vmatpush1.bf16.msra.mxu0 0
    %697 = vmatprep.mubr.bf16.mxu0 0
    %698 = vmatmul.mubr.bf16.gmra.mrb[0].mxu0 %v431
    %v699 = vpop.f32.mrb[0].mxu0
    %v700 = vadd.f32 %v660, %v699
    %v701 = vpop.f32.mrb[0].mxu0
    %v702 = vpop.f32.mrb[0].mxu0
    %v703 = vpop.f32.mrb[0].mxu0
    %704 = vdwg.mxu0
    %v705 = vadd.f32 %v202, %v700
    %v706 = vld [vmem:[%s4 + $0x6] ss:$0 sm:$0xff]
    %v707 = vld [vmem:[%s4 + $0x7] ss:$0 sm:$0xff]
    %v708 = vmul.f32 %v705, %v705
    %v709 = vsel %vm168, %v705, 0.0
    %710 = vadd.xlane.f32.xlu0 %v709
    %v711 = vpop.xlane.xlu0 %710
    %v712 = vsel %vm168, %v708, 0.0
    %713 = vadd.xlane.f32.xlu0 %v712
    %v714 = vpop.xlane.xlu0 %713
    %v715 = vmul.f32 %v705, %v28
    %v716 = vsel %vm168, %v715, 0.0
    %717 = vadd.xlane.f32.xlu0 %v716
    %v718 = vpop.xlane.xlu0 %717
    %v719 = vmul.f32 %v708, %v28
    %v720 = vsel %vm168, %v719, 0.0
    %721 = vadd.xlane.f32.xlu0 %v720
    %v722 = vpop.xlane.xlu0 %721
    %v723 = vsub.f32 %v711, %v718
    %v724 = vsub.f32 %v714, %v722
    %v725 = vmul.f32 %v718, 0.015625
    %v726 = vmul.f32 %v725, %v28
    %v727 = vmul.f32 %v723, 0.03125
    %v728 = vmul.f32 %v727, %v29
    %v729 = vadd.f32 %v726, %v728
    %v730 = vmul.f32 %v722, 0.015625
    %v731 = vmul.f32 %v730, %v28
    %v732 = vmul.f32 %v724, 0.03125
    %v733 = vmul.f32 %v732, %v29
    %v734 = vadd.f32 %v731, %v733
    %v735 = vmul.f32 %v729, %v729
    %v736 = vsub.f32 %v734, %v735
    %v737 = vsub.f32 %v705, %v729
    %v738 = vadd.f32 %v736, 1e-05
    %v739 = vrsqrt.pop %v738
    %v740 = vmul.f32 %v737, %v739
    %v741 = vmul.f32 %v740, %v706
    %v742 = vadd.f32 %v741, %v707
    %v743 = vsel %vm168, %v742, 0.0
    %744 = vadd.xlane.f32.xlu0 %v743
    %v745 = vpop.xlane.xlu0 %744
    %v746 = vrcp.pop 96.0
    %v747 = vmul.f32 %v745, %v746
    %v748 = vmul.f32 %v742, %v742
    %v749 = vsel %vm168, %v748, 0.0
    %750 = vadd.xlane.f32.xlu0 %v749
    %v751 = vpop.xlane.xlu0 %750
    %v752 = vmul.f32 %v751, %v746
    %v753 = vsub.f32 %v742, %v747
    %v754 = vmul.f32 %v747, %v747
    %v755 = vsub.f32 %v752, %v754
    %v756 = vadd.f32 %v755, 1e-05
    %v757 = vrsqrt.pop %v756
    %v758 = vmul.f32 %v753, %v757
    %v759 = vpack.c.bf16 %v758, %v758
    %v760 = vld [vmem:[%s3] sm:$0xf]
    %v761 = vld [vmem:[%s3 + $0x4] sm:$0xf]
    %v762 = vld [vmem:[%s3 + $0x8] sm:$0xf]
    %v763 = vld [vmem:[%s3 + $0xc] sm:$0xf]
    %v764 = vld [vmem:[%s3 + $0x10] sm:$0xf]
    %v765 = vld [vmem:[%s3 + $0x14] sm:$0xf]
    %v766 = vld [vmem:[%s3 + $0x18] sm:$0xf]
    %v767 = vld [vmem:[%s3 + $0x1c] sm:$0xf]
    %v768 = vld [vmem:[%s3 + $0x20] sm:$0xf]
    %v769 = vld [vmem:[%s3 + $0x24] sm:$0xf]
    %v770 = vld [vmem:[%s3 + $0x28] sm:$0xf]
    %v771 = vld [vmem:[%s3 + $0x2c] sm:$0xf]
    %v772 = vld [vmem:[%s4 + $0x18] ss:$0 sm:$0xff]
    %v785 = vunpack.c.l.b16 %v760
    %v786 = vunpack.c.l.b16 %v761
    %v787 = vunpack.c.l.b16 %v762
    %v788 = vunpack.c.l.b16 %v763
    %v789 = vunpack.c.l.b16 %v764
    %v790 = vunpack.c.l.b16 %v765
    %v791 = vunpack.c.l.b16 %v766
    %v792 = vunpack.c.l.b16 %v767
    %v793 = vunpack.c.l.b16 %v768
    %v794 = vunpack.c.l.b16 %v769
    %v795 = vunpack.c.l.b16 %v770
    %v796 = vunpack.c.l.b16 %v771
    %v797 = vpack.c.b16 %v786, %v785
    %v798 = vpack.c.b16 %v788, %v787
    %v799 = vpack.c.b16 %v790, %v789
    %v800 = vpack.c.b16 %v792, %v791
    %v801 = vpack.c.b16 %v794, %v793
    %v802 = vpack.c.b16 %v796, %v795
    %v810 = vsel %vm168, %v759, 0
    %812 = vmatprep.subr.bf16.mxu0 0
    %813 = vmatpush1.bf16.msra.mxu0 %v797
    %814 = vmatprep.subr.bf16.mxu0 0
    %815 = vmatpush1.bf16.msra.mxu0 %v798
    %816 = vmatprep.subr.bf16.mxu0 0
    %817 = vmatpush1.bf16.msra.mxu0 %v799
    %818 = vmatprep.subr.bf16.mxu0 0
    %819 = vmatpush1.bf16.msra.mxu0 %v800
    %820 = vmatprep.subr.bf16.mxu0 0
    %821 = vmatpush1.bf16.msra.mxu0 %v801
    %822 = vmatprep.subr.bf16.mxu0 0
    %823 = vmatpush1.bf16.msra.mxu0 %v802
    %824 = vmatprep.subr.bf16.mxu0 0
    %825 = vmatpush1.bf16.msra.mxu0 0
    %826 = vmatprep.subr.bf16.mxu0 0
    %827 = vmatpush1.bf16.msra.mxu0 0
    %828 = vmatprep.subr.bf16.mxu0 0
    %829 = vmatpush1.bf16.msra.mxu0 0
    %830 = vmatprep.subr.bf16.mxu0 0
    %831 = vmatpush1.bf16.msra.mxu0 0
    %832 = vmatprep.subr.bf16.mxu0 0
    %833 = vmatpush1.bf16.msra.mxu0 0
    %834 = vmatprep.subr.bf16.mxu0 0
    %835 = vmatpush1.bf16.msra.mxu0 0
    %836 = vmatprep.subr.bf16.mxu0 0
    %837 = vmatpush1.bf16.msra.mxu0 0
    %838 = vmatprep.subr.bf16.mxu0 0
    %839 = vmatpush1.bf16.msra.mxu0 0
    %840 = vmatprep.subr.bf16.mxu0 0
    %841 = vmatpush1.bf16.msra.mxu0 0
    %842 = vmatprep.subr.bf16.mxu0 0
    %843 = vmatpush1.bf16.msra.mxu0 0
    %844 = vmatprep.mubr.bf16.mxu0 0
    %845 = vmatmul.mubr.bf16.gmra.mrb[0].mxu0 %v810
    %v846 = vpop.f32.mrb[0].mxu0
    %v847 = vadd.f32 %v772, %v846
    %v848 = vpop.f32.mrb[0].mxu0
    %v849 = vpop.f32.mrb[0].mxu0
    %v850 = vpop.f32.mrb[0].mxu0
    %851 = vdwg.mxu0
    %852 = vst [vmem:[#allocation2] sm:$0xff] %v847
    // Predicated region
    $region22: #{tpu_custom_call.1} parent=1 // pred_check
      _
    $region23: #{tpu_custom_call.1} parent=1 // pred_check_branch
      %854 = sbr.rel (0) target = $region25
    $region24: #{tpu_custom_call.1} parent=1 // pred_region
      %s856 = ssub.s32 128, 128
      %857 = vsyncadd [#allocation3], %s856
      %s859 = sshll.u32 [#allocation2], 4
      %s860 = int_to_ptr.vmem [resolvable:$true] %s859
      %862 = dma.vmem_to_hbm [thread:$0]  %s860, 128, %s5, [#allocation3]
    $region25: #{tpu_custom_call.1} parent=1 // pred_fallthru
      _
    // Predicated region
    $region26: #{tpu_custom_call.1} parent=1 // pred_check
      _
    $region27: #{tpu_custom_call.1} parent=1 // pred_check_branch
      %864 = sbr.rel (0) target = $region29
    $region28: #{tpu_custom_call.1} parent=1 // pred_region
      %865 = dma.done [#allocation3], 128
    $region29: #{tpu_custom_call.1} parent=1 // pred_fallthru
      _
    %866 = vsyncpa [#allocation3], 1

</llo_original>
